<compile_context>
chip_gen: v7x
topology: tpu7x:2x2x1
jax: 0.10.0
libtpu: 0.0.40
codegen_flags: <defaults>
</compile_context>

<pallas_src>
import jax
import jax.numpy as jnp
from jax.experimental import pallas as pl
from jax.experimental.pallas import tpu as pltpu

_LANE = 128     # lane width: every feature dim is padded to a multiple of this
_SUBLANE = 8    # f32/bf16-safe sublane granularity for the batch tile


def _round_up(x, m):
    return ((x + m - 1) // m) * m


def _cdiv(a, b):
    return -(-a // b)


# --------------------------------------------------------------------------
# One-time hardware / capability probes (never re-run per forward call).
# --------------------------------------------------------------------------
_VMEM_CAPACITY = None
_BUFFERED_ONE_OK = None


def _vmem_capacity_bytes():
    global _VMEM_CAPACITY
    if _VMEM_CAPACITY is None:
        try:
            _VMEM_CAPACITY = int(pltpu.get_tpu_info().vmem_capacity_bytes)
        except Exception:
            _VMEM_CAPACITY = 64 * 2**20          # conservative (v7x-sized) fallback
    return _VMEM_CAPACITY


def _buffered_one_supported():
    """One-time capability check: does this jax accept pipeline_mode=Buffered(1)?

    Uses lowering+compilation of a trivial kernel (never executes, never
    double-runs the real MLP kernel)."""
    global _BUFFERED_ONE_OK
    if _BUFFERED_ONE_OK is None:
        def _probe_kernel(x_ref, o_ref):
            o_ref[...] = x_ref[...]
        try:
            fn = pl.pallas_call(
                _probe_kernel,
                out_shape=jax.ShapeDtypeStruct((_SUBLANE, _LANE), jnp.float32),
                grid=(1,),
                in_specs=[pl.BlockSpec((_SUBLANE, _LANE), lambda i: (0, 0),
                                       pipeline_mode=pl.Buffered(1))],
                out_specs=pl.BlockSpec((_SUBLANE, _LANE), lambda i: (0, 0)),
            )
            jax.jit(fn).lower(
                jax.ShapeDtypeStruct((_SUBLANE, _LANE), jnp.float32)).compile()
            _BUFFERED_ONE_OK = True
        except Exception:
            _BUFFERED_ONE_OK = False
    return _BUFFERED_ONE_OK


# --------------------------------------------------------------------------
# Kernel
# --------------------------------------------------------------------------
def _mlp_kernel(x_ref, *refs):
    """Fused MLP on one [batch_tile, in_dim_padded] activation tile.

    refs = (w0, b0, w1, b1, ..., wL, bL, out_ref).
    Weights are (in, out) in the compute dtype (bf16); biases (1, out) in f32.
    All feature dims pre-padded to multiples of 128.
    """
    out_ref = refs[-1]
    wb_refs = refs[:-1]
    n_layers = len(wb_refs) // 2

    h = x_ref[...]                                   # compute dtype (bf16) -> MXU
    for i in range(n_layers):
        w = wb_refs[2 * i][...]                      # (in_p, out_p), compute dtype
        b = wb_refs[2 * i + 1][...]                  # (1, out_p), f32
        # TODO(synk): training-mode dropout would mask `h` here for i != 0.
        acc = jnp.dot(h, w, preferred_element_type=jnp.float32)   # f32 accumulate
        acc = jnp.maximum(acc + b, 0.0)              # bias + ReLU on the VPU (f32)
        if i + 1 < n_layers:
            h = acc.astype(h.dtype)                  # narrow only when another matmul follows
        else:
            out_ref[...] = acc.astype(out_ref.dtype)  # write f32 acc directly


# --------------------------------------------------------------------------
# Wrapper: pad/cast params once, jit the whole forward.
# --------------------------------------------------------------------------
class PallasMLP:
    def __init__(self, weights, biases, *, compute_dtype=jnp.bfloat16,
                 max_batch_tile=2048):
        self.compute_dtype = compute_dtype
        self.max_batch_tile = int(max_batch_tile)
        self.in_dim = int(weights[0].shape[0])
        self.out_dim = int(weights[-1].shape[1])

        dims = [self.in_dim] + [int(w.shape[1]) for w in weights]
        self.pdims = [_round_up(d, _LANE) for d in dims]

        # One-time padding + dtype conversion (NOT in the per-call hot path).
        pw, pb = [], []
        for i, (w, b) in enumerate(zip(weights, biases)):
            wp = jnp.pad(jnp.asarray(w, compute_dtype),
                         ((0, self.pdims[i] - w.shape[0]),
                          (0, self.pdims[i + 1] - w.shape[1])))
            bp = jnp.pad(jnp.asarray(b, jnp.float32),
                         (0, self.pdims[i + 1] - b.shape[0])).reshape(1, -1)
            pw.append(wp)
            pb.append(bp)
        self.pw = tuple(pw)
        self.pb = tuple(pb)

        self._weight_bufs = 1 if _buffered_one_supported() else 2
        self._vmem_budget = (_vmem_capacity_bytes() * 3) // 4   # 48 MiB v7x, 96 MiB v5e/v6e
        self._vmem_cap = _vmem_capacity_bytes() - 8 * 2**20     # never hand Mosaic all of VMEM

        self._jitted = jax.jit(self._run)

    # ---- VMEM footprint estimate for one grid step --------------------------
    def _vmem_estimate(self, bt, out_itemsize):
        pd = self.pdims
        cd = jnp.dtype(self.compute_dtype).itemsize
        io = 2 * bt * (pd[0] * cd + pd[-1] * out_itemsize)       # double-buffered x / out
        w_elems = sum(pd[i] * pd[i + 1] for i in range(len(pd) - 1))
        b_elems = sum(pd[1:])
        wgt = self._weight_bufs * (w_elems * cd + b_elems * 4)   # resident weights + biases
        # widest live layer intermediate: bf16 input h + f32 acc (+ slack copy)
        live = max(bt * (pd[i] * cd + 2 * pd[i + 1] * 4)
                   for i in range(len(pd) - 1))
        return io + wgt + live

    # ---- traced forward (all shape logic is static at trace time) ----------
    def _run(self, x, *params):
        n_layers = len(self.pdims) - 1
        pw = params[:n_layers]
        pb = params[n_layers:]
        pd = self.pdims
        B, in_dim = x.shape
        out_dtype = x.dtype
        oi = jnp.dtype(out_dtype).itemsize

        # Largest tile (multiple of 8) within the generation-aware VMEM budget.
        max_tile = _round_up(min(self.max_batch_tile, max(B, _SUBLANE)), _SUBLANE)
        while max_tile > _SUBLANE and self._vmem_estimate(max_tile, oi) > self._vmem_budget:
            max_tile -= _SUBLANE

        steps = _cdiv(B, max_tile)
        # v7x megacore: split large batches across both TensorCores; keep a
        # single tile for small batches (splitting would only duplicate the
        # per-core resident-weight DMA).
        if B >= 1024 and steps < 2:
            steps = 2
        tile = _round_up(_cdiv(B, steps), _SUBLANE)
        Bp = tile * steps

        # Pad x only if actually needed; cast to the MXU compute dtype.
        if Bp != B or pd[0] != in_dim:
            x = jnp.pad(x, ((0, Bp - B), (0, pd[0] - in_dim)))
        if x.dtype != self.compute_dtype:
            x = x.astype(self.compute_dtype)

        # BlockSpecs: activation tiles step along the batch; weights/biases are
        # resident (constant index map), single-buffered when supported.
        in_specs = [pl.BlockSpec((tile, pd[0]), lambda i: (i, 0))]
        wb_args = []
        for wi, bi in zip(pw, pb):
            if self._weight_bufs == 1:
                in_specs.append(pl.BlockSpec(wi.shape, lambda i: (0, 0),
                                             pipeline_mode=pl.Buffered(1)))
                in_specs.append(pl.BlockSpec(bi.shape, lambda i: (0, 0),
                                             pipeline_mode=pl.Buffered(1)))
            else:
                in_specs.append(pl.BlockSpec(wi.shape, lambda i: (0, 0)))
                in_specs.append(pl.BlockSpec(bi.shape, lambda i: (0, 0)))
            wb_args.extend([wi, bi])
        out_spec = pl.BlockSpec((tile, pd[-1]), lambda i: (i, 0))

        est = self._vmem_estimate(tile, oi)
        vmem_limit = int(min(self._vmem_cap, max(32 * 2**20, 2 * est)))

        cd = jnp.dtype(self.compute_dtype).itemsize
        w_elems = sum(pd[i] * pd[i + 1] for i in range(n_layers))
        b_elems = sum(pd[1:])
        cost = pl.CostEstimate(
            flops=2 * Bp * w_elems,
            transcendentals=0,
            bytes_accessed=(Bp * pd[0] * cd + Bp * pd[-1] * oi
                            + w_elems * cd + b_elems * 4),
        )

        out = pl.pallas_call(
            _mlp_kernel,
            out_shape=jax.ShapeDtypeStruct((Bp, pd[-1]), out_dtype),
            grid_spec=pltpu.PrefetchScalarGridSpec(
                num_scalar_prefetch=0,
                grid=(steps,),
                in_specs=in_specs,
                out_specs=out_spec,
            ),
            compiler_params=pltpu.CompilerParams(
                dimension_semantics=("parallel",),   # batch tiles shard across TCs
                vmem_limit_bytes=vmem_limit,
            ),
            cost_estimate=cost,
        )(x, *wb_args)

        if Bp != B or pd[-1] != self.out_dim:
            out = out[:B, :self.out_dim]
        return out

    def __call__(self, x):
        return self._jitted(x, *self.pw, *self.pb)


# --------------------------------------------------------------------------
# Parameter init + reference (mirrors the bf16-on-MXU numerics of the kernel)
# --------------------------------------------------------------------------
def init_mlp_params(key, n_layer, input_dim, output_dim, n_hidden,
                    dtype=jnp.float32):
    """Deterministic init matching the nn.Linear shapes of the module."""
    dims = [input_dim] + [n_hidden] * (n_layer - 1) + [output_dim]
    weights, biases = [], []
    for i in range(n_layer):
        key, wk, bk = jax.random.split(key, 3)
        bound = 1.0 / float(dims[i]) ** 0.5
        # PyTorch stores (out, in); we keep the transposed (in, out) layout.
        w = jax.random.uniform(wk, (dims[i], dims[i + 1]), dtype,
                               minval=-bound, maxval=bound)
        b = jax.random.uniform(bk, (dims[i + 1],), dtype,
                               minval=-bound, maxval=bound)
        weights.append(w)
        biases.append(b)
    return weights, biases


def mlp_reference(x, weights, biases, compute_dtype=jnp.bfloat16):
    """Pure-JAX reference with the same bf16-operand / f32-accumulate numerics."""
    h = x
    for w, b in zip(weights, biases):
        acc = jnp.dot(h.astype(compute_dtype), w.astype(compute_dtype),
                      preferred_element_type=jnp.float32)
        h = jnp.maximum(acc + b.astype(jnp.float32), 0.0)
    return h.astype(x.dtype)


if __name__ == "__main__":
    # Shapes consistent with MLP(n_layer=3, input_dim=16, output_dim=8,
    # n_hidden=32) applied to a [batch, input_dim] input.
    n_layer, input_dim, output_dim, n_hidden = 3, 16, 8, 32

    key = jax.random.PRNGKey(0)
    key, xk1, xk2 = jax.random.split(key, 3)
    weights, biases = init_mlp_params(key, n_layer, input_dim, output_dim,
                                      n_hidden)

    mlp = PallasMLP(weights, biases)                          # single-tile path
    mlp_tiled = PallasMLP(weights, biases, max_batch_tile=32)  # forces grid=2 for B=64

    # 1) tiny batch (single grid step).
    x_small = jax.random.normal(xk1, (8, input_dim), jnp.float32)
    out_small = jax.block_until_ready(mlp(x_small))
    ref_small = mlp_reference(x_small, weights, biases)
    assert out_small.shape == (8, output_dim), out_small.shape
    assert jnp.allclose(out_small, ref_small, atol=1e-3, rtol=1e-3), (
        float(jnp.max(jnp.abs(out_small - ref_small))))

    # 2) larger batch exercising the multi-step (pipelined / megacore) path.
    x_big = jax.random.normal(xk2, (64, input_dim), jnp.float32)
    out_big = jax.block_until_ready(mlp_tiled(x_big))
    ref_big = mlp_reference(x_big, weights, biases)
    assert out_big.shape == (64, output_dim), out_big.shape
    assert jnp.allclose(out_big, ref_big, atol=1e-3, rtol=1e-3), (
        float(jnp.max(jnp.abs(out_big - ref_big))))

    # 3) same batch through the default (single-tile) config for consistency.
    out_big2 = jax.block_until_ready(mlp(x_big))
    assert jnp.allclose(out_big2, ref_big, atol=1e-3, rtol=1e-3), (
        float(jnp.max(jnp.abs(out_big2 - ref_big))))

    print("KERNEL_OK")
</pallas_src>

<mosaic_0001>
module attributes {stable_mosaic.version = 11 : i64} {
  func.func @_mlp_kernel(%arg0: i32, %arg1: memref<8x128xbf16, #tpu.memory_space<vmem>>, %arg2: memref<128x128xbf16, #tpu.memory_space<vmem>>, %arg3: memref<1x128xf32, #tpu.memory_space<vmem>>, %arg4: memref<128x128xbf16, #tpu.memory_space<vmem>>, %arg5: memref<1x128xf32, #tpu.memory_space<vmem>>, %arg6: memref<128x128xbf16, #tpu.memory_space<vmem>>, %arg7: memref<1x128xf32, #tpu.memory_space<vmem>>, %arg8: memref<8x128xf32, #tpu.memory_space<vmem>>) attributes {dimension_semantics = [#tpu.dimension_semantics<parallel>], iteration_bounds = array<i64: 1>, scalar_prefetch = 0 : i64, scratch_operands = 0 : i64, tpu.core_type = #tpu.core_type<tc>, window_params = [{transform_indices = @transform_0, window_bounds = array<i64: 8, 128>}, {pipeline_mode = #tpu.pipeline_mode<synchronous>, transform_indices = @transform_1, window_bounds = array<i64: 128, 128>}, {pipeline_mode = #tpu.pipeline_mode<synchronous>, transform_indices = @transform_2, window_bounds = array<i64: 1, 128>}, {pipeline_mode = #tpu.pipeline_mode<synchronous>, transform_indices = @transform_3, window_bounds = array<i64: 128, 128>}, {pipeline_mode = #tpu.pipeline_mode<synchronous>, transform_indices = @transform_4, window_bounds = array<i64: 1, 128>}, {pipeline_mode = #tpu.pipeline_mode<synchronous>, transform_indices = @transform_5, window_bounds = array<i64: 128, 128>}, {pipeline_mode = #tpu.pipeline_mode<synchronous>, transform_indices = @transform_6, window_bounds = array<i64: 1, 128>}, {transform_indices = @transform_7, window_bounds = array<i64: 8, 128>}]} {
    %c0 = arith.constant 0 : index
    %c0_0 = arith.constant 0 : index
    %0 = vector.load %arg1[%c0, %c0_0] : memref<8x128xbf16, #tpu.memory_space<vmem>>, vector<8x128xbf16>
    %c0_1 = arith.constant 0 : index
    %c0_2 = arith.constant 0 : index
    %1 = vector.load %arg2[%c0_1, %c0_2] : memref<128x128xbf16, #tpu.memory_space<vmem>>, vector<128x128xbf16>
    %c0_3 = arith.constant 0 : index
    %c0_4 = arith.constant 0 : index
    %2 = vector.load %arg3[%c0_3, %c0_4] : memref<1x128xf32, #tpu.memory_space<vmem>>, vector<1x128xf32>
    %cst = arith.constant dense<0.000000e+00> : vector<8x128xf32>
    %3 = tpu.matmul %0, %1, %cst {dimension_numbers = #tpu.dot_dimension_numbers<[1], [0], [0], [1], [0, 0, 1, 1], [], []>} : vector<8x128xbf16>, vector<128x128xbf16>, vector<8x128xf32> -> vector<8x128xf32>
    %4 = vector.broadcast %2 : vector<1x128xf32> to vector<8x128xf32>
    %5 = arith.addf %3, %4 : vector<8x128xf32>
    %cst_5 = arith.constant 0.000000e+00 : f32
    %6 = vector.broadcast %cst_5 : f32 to vector<8x128xf32>
    %7 = arith.maximumf %5, %6 : vector<8x128xf32>
    %8 = arith.truncf %7 : vector<8x128xf32> to vector<8x128xbf16>
    %c0_6 = arith.constant 0 : index
    %c0_7 = arith.constant 0 : index
    %9 = vector.load %arg4[%c0_6, %c0_7] : memref<128x128xbf16, #tpu.memory_space<vmem>>, vector<128x128xbf16>
    %c0_8 = arith.constant 0 : index
    %c0_9 = arith.constant 0 : index
    %10 = vector.load %arg5[%c0_8, %c0_9] : memref<1x128xf32, #tpu.memory_space<vmem>>, vector<1x128xf32>
    %cst_10 = arith.constant dense<0.000000e+00> : vector<8x128xf32>
    %11 = tpu.matmul %8, %9, %cst_10 {dimension_numbers = #tpu.dot_dimension_numbers<[1], [0], [0], [1], [0, 0, 1, 1], [], []>} : vector<8x128xbf16>, vector<128x128xbf16>, vector<8x128xf32> -> vector<8x128xf32>
    %12 = vector.broadcast %10 : vector<1x128xf32> to vector<8x128xf32>
    %13 = arith.addf %11, %12 : vector<8x128xf32>
    %cst_11 = arith.constant 0.000000e+00 : f32
    %14 = vector.broadcast %cst_11 : f32 to vector<8x128xf32>
    %15 = arith.maximumf %13, %14 : vector<8x128xf32>
    %16 = arith.truncf %15 : vector<8x128xf32> to vector<8x128xbf16>
    %c0_12 = arith.constant 0 : index
    %c0_13 = arith.constant 0 : index
    %17 = vector.load %arg6[%c0_12, %c0_13] : memref<128x128xbf16, #tpu.memory_space<vmem>>, vector<128x128xbf16>
    %c0_14 = arith.constant 0 : index
    %c0_15 = arith.constant 0 : index
    %18 = vector.load %arg7[%c0_14, %c0_15] : memref<1x128xf32, #tpu.memory_space<vmem>>, vector<1x128xf32>
    %cst_16 = arith.constant dense<0.000000e+00> : vector<8x128xf32>
    %19 = tpu.matmul %16, %17, %cst_16 {dimension_numbers = #tpu.dot_dimension_numbers<[1], [0], [0], [1], [0, 0, 1, 1], [], []>} : vector<8x128xbf16>, vector<128x128xbf16>, vector<8x128xf32> -> vector<8x128xf32>
    %20 = vector.broadcast %18 : vector<1x128xf32> to vector<8x128xf32>
    %21 = arith.addf %19, %20 : vector<8x128xf32>
    %cst_17 = arith.constant 0.000000e+00 : f32
    %22 = vector.broadcast %cst_17 : f32 to vector<8x128xf32>
    %23 = arith.maximumf %21, %22 : vector<8x128xf32>
    %c0_18 = arith.constant 0 : index
    %c0_19 = arith.constant 0 : index
    %24 = vector.load %arg8[%c0_18, %c0_19] : memref<8x128xf32, #tpu.memory_space<vmem>>, vector<8x128xf32>
    tpu.vector_store %arg8[%c0_18, %c0_19], %23 {strides = array<i32>} : memref<8x128xf32, #tpu.memory_space<vmem>>, vector<8x128xf32>,
    return
  }
  func.func @transform_0(%arg0: i32) -> (i32, i32) {
    %c0_i32 = arith.constant 0 : i32
    %c0_i32_0 = arith.constant 0 : i32
    return %arg0, %c0_i32 : i32, i32
  }
  func.func @transform_1(%arg0: i32) -> (i32, i32) {
    %c0_i32 = arith.constant 0 : i32
    %c0_i32_0 = arith.constant 0 : i32
    %c0_i32_1 = arith.constant 0 : i32
    return %c0_i32, %c0_i32_0 : i32, i32
  }
  func.func @transform_2(%arg0: i32) -> (i32, i32) {
    %c0_i32 = arith.constant 0 : i32
    %c0_i32_0 = arith.constant 0 : i32
    %c0_i32_1 = arith.constant 0 : i32
    return %c0_i32, %c0_i32_0 : i32, i32
  }
  func.func @transform_3(%arg0: i32) -> (i32, i32) {
    %c0_i32 = arith.constant 0 : i32
    %c0_i32_0 = arith.constant 0 : i32
    %c0_i32_1 = arith.constant 0 : i32
    return %c0_i32, %c0_i32_0 : i32, i32
  }
  func.func @transform_4(%arg0: i32) -> (i32, i32) {
    %c0_i32 = arith.constant 0 : i32
    %c0_i32_0 = arith.constant 0 : i32
    %c0_i32_1 = arith.constant 0 : i32
    return %c0_i32, %c0_i32_0 : i32, i32
  }
  func.func @transform_5(%arg0: i32) -> (i32, i32) {
    %c0_i32 = arith.constant 0 : i32
    %c0_i32_0 = arith.constant 0 : i32
    %c0_i32_1 = arith.constant 0 : i32
    return %c0_i32, %c0_i32_0 : i32, i32
  }
  func.func @transform_6(%arg0: i32) -> (i32, i32) {
    %c0_i32 = arith.constant 0 : i32
    %c0_i32_0 = arith.constant 0 : i32
    %c0_i32_1 = arith.constant 0 : i32
    return %c0_i32, %c0_i32_0 : i32, i32
  }
  func.func @transform_7(%arg0: i32) -> (i32, i32) {
    %c0_i32 = arith.constant 0 : i32
    %c0_i32_0 = arith.constant 0 : i32
    return %arg0, %c0_i32 : i32, i32
  }
}

</mosaic_0001>

<llo_original>
// kernel: _run.1
$region0: #{_run.1}
  #allocation0 [shape = 'u32[]', space=smem, size = 0x4, offset = 0x4, fixed_abs, tag = 'smem constant byte address 0x4 - core index']
  #allocation1 [shape = 'u32[144,128]{1,0:T(1,128)}', space=vmem, size = 0x12000, scoped, tag = 'internal scratch']
  %s0 = inlined_call_operand.vmem [shape: bf16[8,128], index: 0, kind: input, shape index: {}]
  %s1 = inlined_call_operand.hbm [shape: bf16[128,128], index: 1, kind: input, shape index: {}]
  %s2 = inlined_call_operand.vmem [shape: f32[1,128], index: 2, kind: input, shape index: {}]
  %s3 = inlined_call_operand.hbm [shape: bf16[128,128], index: 3, kind: input, shape index: {}]
  %s4 = inlined_call_operand.vmem [shape: f32[1,128], index: 4, kind: input, shape index: {}]
  %s5 = inlined_call_operand.hbm [shape: bf16[128,128], index: 5, kind: input, shape index: {}]
  %s6 = inlined_call_operand.vmem [shape: f32[1,128], index: 6, kind: input, shape index: {}]
  %s7 = inlined_call_operand.hbm [shape: f32[8,128], index: 7, kind: output, shape index: {}]
  %s8 = sld [smem:[#allocation0]]
  $region50: #{_run.1} parent=0
    _
  %s10 = ssub.s32 1, %s8
  %s11 = scalar_select 0, %s10, %s8
  $region1: #{_run.1} parent=0
    #allocation2 [shape = 'u8[32768]{0}', space=vmem, size = 0x8000, scoped, tag = 'input window, operand 1, single buffered']
    #allocation3 [shape = 's32[1]{0}', space=sflag, size = 0x4, scoped, tag = 'scoped memory for _run.1']
    #allocation4 [shape = 's32[1]{0}', space=sflag, size = 0x4, scoped, tag = 'scoped memory for _run.1']
    #allocation5 [shape = 'u8[32768]{0}', space=vmem, size = 0x8000, scoped, tag = 'input window, operand 3, single buffered']
    #allocation6 [shape = 's32[1]{0}', space=sflag, size = 0x4, scoped, tag = 'scoped memory for _run.1']
    #allocation7 [shape = 'u8[32768]{0}', space=vmem, size = 0x8000, scoped, tag = 'input window, operand 5, single buffered']
    #allocation8 [shape = 'u8[4096]{0}', space=vmem, size = 0x1000, scoped, tag = 'output window, operand 0, single buffered']
    %12 = vsyncpa [#allocation3], 0
    %13 = vsyncpa [#allocation6], 0
    %14 = vsyncpa [#allocation4], 0
    // Predicated region
    $region2: #{_run.1} parent=1 // pred_check
      _
    $region3: #{_run.1} parent=1 // pred_check_branch
      %16 = sbr.rel (0) target = $region5
    $region4: #{_run.1} parent=1 // pred_region
      _
    $region5: #{_run.1} parent=1 // pred_fallthru
      _
    // Predicated region
    $region6: #{_run.1} parent=1 // pred_check
      _
    $region7: #{_run.1} parent=1 // pred_check_branch
      %18 = sbr.rel (0) target = $region9
    $region8: #{_run.1} parent=1 // pred_region
      %s20 = ssub.s32 1024, 1024
      %21 = vsyncadd [#allocation3], %s20
      %s22 = sshll.u32 [#allocation2], 4
      %s23 = int_to_ptr.vmem [resolvable:$true] %s22
      %28 = dma.hbm_to_vmem [thread:$0]  %s1, 1024, %s23, [#allocation3], 64, 64, 4
    $region9: #{_run.1} parent=1 // pred_fallthru
      _
    // Predicated region
    $region10: #{_run.1} parent=1 // pred_check
      _
    $region11: #{_run.1} parent=1 // pred_check_branch
      %30 = sbr.rel (0) target = $region13
    $region12: #{_run.1} parent=1 // pred_region
      _
    $region13: #{_run.1} parent=1 // pred_fallthru
      _
    // Predicated region
    $region14: #{_run.1} parent=1 // pred_check
      _
    $region15: #{_run.1} parent=1 // pred_check_branch
      %32 = sbr.rel (0) target = $region17
    $region16: #{_run.1} parent=1 // pred_region
      %s34 = ssub.s32 1024, 1024
      %35 = vsyncadd [#allocation6], %s34
      %s36 = sshll.u32 [#allocation5], 4
      %s37 = int_to_ptr.vmem [resolvable:$true] %s36
      %42 = dma.hbm_to_vmem [thread:$0]  %s3, 1024, %s37, [#allocation6], 64, 64, 4
    $region17: #{_run.1} parent=1 // pred_fallthru
      _
    // Predicated region
    $region18: #{_run.1} parent=1 // pred_check
      _
    $region19: #{_run.1} parent=1 // pred_check_branch
      %44 = sbr.rel (0) target = $region21
    $region20: #{_run.1} parent=1 // pred_region
      _
    $region21: #{_run.1} parent=1 // pred_fallthru
      _
    // Predicated region
    $region22: #{_run.1} parent=1 // pred_check
      _
    $region23: #{_run.1} parent=1 // pred_check_branch
      %46 = sbr.rel (0) target = $region25
    $region24: #{_run.1} parent=1 // pred_region
      %s48 = ssub.s32 1024, 1024
      %49 = vsyncadd [#allocation6], %s48
      %s50 = sshll.u32 [#allocation7], 4
      %s51 = int_to_ptr.vmem [resolvable:$true] %s50
      %56 = dma.hbm_to_vmem [thread:$0]  %s5, 1024, %s51, [#allocation6], 64, 64, 4
    $region25: #{_run.1} parent=1 // pred_fallthru
      _
    // Predicated region
    $region26: #{_run.1} parent=1 // pred_check
      _
    $region27: #{_run.1} parent=1 // pred_check_branch
      %58 = sbr.rel (0) target = $region29
    $region28: #{_run.1} parent=1 // pred_region
      _
    $region29: #{_run.1} parent=1 // pred_fallthru
      _
    // Predicated region
    $region30: #{_run.1} parent=1 // pred_check
      _
    $region31: #{_run.1} parent=1 // pred_check_branch
      %60 = sbr.rel (0) target = $region33
    $region32: #{_run.1} parent=1 // pred_region
      %61 = dma.done [#allocation3], 1024
    $region33: #{_run.1} parent=1 // pred_fallthru
      _
    // Predicated region
    $region34: #{_run.1} parent=1 // pred_check
      _
    $region35: #{_run.1} parent=1 // pred_check_branch
      %63 = sbr.rel (0) target = $region37
    $region36: #{_run.1} parent=1 // pred_region
      %64 = dma.done [#allocation6], 1024
    $region37: #{_run.1} parent=1 // pred_fallthru
      _
    // Predicated region
    $region38: #{_run.1} parent=1 // pred_check
      _
    $region39: #{_run.1} parent=1 // pred_check_branch
      %66 = sbr.rel (0) target = $region41
    $region40: #{_run.1} parent=1 // pred_region
      %67 = dma.done [#allocation6], 1024
    $region41: #{_run.1} parent=1 // pred_fallthru
      _
    %v69 = vld [vmem:[%s0] sm:$0xf]
    %v70 = vld [vmem:[#allocation2] sm:$0xf]
    %v71 = vld [vmem:[#allocation2 + $0x4] sm:$0xf]
    %v72 = vld [vmem:[#allocation2 + $0x8] sm:$0xf]
    %v73 = vld [vmem:[#allocation2 + $0xc] sm:$0xf]
    %v74 = vld [vmem:[#allocation2 + $0x10] sm:$0xf]
    %v75 = vld [vmem:[#allocation2 + $0x14] sm:$0xf]
    %v76 = vld [vmem:[#allocation2 + $0x18] sm:$0xf]
    %v77 = vld [vmem:[#allocation2 + $0x1c] sm:$0xf]
    %v78 = vld [vmem:[#allocation2 + $0x20] sm:$0xf]
    %v79 = vld [vmem:[#allocation2 + $0x24] sm:$0xf]
    %v80 = vld [vmem:[#allocation2 + $0x28] sm:$0xf]
    %v81 = vld [vmem:[#allocation2 + $0x2c] sm:$0xf]
    %v82 = vld [vmem:[#allocation2 + $0x30] sm:$0xf]
    %v83 = vld [vmem:[#allocation2 + $0x34] sm:$0xf]
    %v84 = vld [vmem:[#allocation2 + $0x38] sm:$0xf]
    %v85 = vld [vmem:[#allocation2 + $0x3c] sm:$0xf]
    %v86 = vld [vmem:[%s2] sm:$0x1]
    %v88 = vlaneseq
    %v89 = vshrl.u32 %v88, 7
    %v90 = vsub.s32 0, %v89
    %v91 = vrot.slane %v86, %v90
    %v109 = vunpack.c.l.b16 %v70
    %v110 = vunpack.c.l.b16 %v71
    %v111 = vunpack.c.l.b16 %v72
    %v112 = vunpack.c.l.b16 %v73
    %v113 = vunpack.c.l.b16 %v74
    %v114 = vunpack.c.l.b16 %v75
    %v115 = vunpack.c.l.b16 %v76
    %v116 = vunpack.c.l.b16 %v77
    %v117 = vunpack.c.l.b16 %v78
    %v118 = vunpack.c.l.b16 %v79
    %v119 = vunpack.c.l.b16 %v80
    %v120 = vunpack.c.l.b16 %v81
    %v121 = vunpack.c.l.b16 %v82
    %v122 = vunpack.c.l.b16 %v83
    %v123 = vunpack.c.l.b16 %v84
    %v124 = vunpack.c.l.b16 %v85
    %v125 = vpack.c.b16 %v110, %v109
    %v126 = vpack.c.b16 %v112, %v111
    %v127 = vpack.c.b16 %v114, %v113
    %v128 = vpack.c.b16 %v116, %v115
    %v129 = vpack.c.b16 %v118, %v117
    %v130 = vpack.c.b16 %v120, %v119
    %v131 = vpack.c.b16 %v122, %v121
    %v132 = vpack.c.b16 %v124, %v123
    %141 = vmatprep.subr.bf16.mxu0 0
    %142 = vmatpush1.bf16.msra.mxu0 %v125
    %143 = vmatprep.subr.bf16.mxu0 0
    %144 = vmatpush1.bf16.msra.mxu0 %v126
    %145 = vmatprep.subr.bf16.mxu0 0
    %146 = vmatpush1.bf16.msra.mxu0 %v127
    %147 = vmatprep.subr.bf16.mxu0 0
    %148 = vmatpush1.bf16.msra.mxu0 %v128
    %149 = vmatprep.subr.bf16.mxu0 0
    %150 = vmatpush1.bf16.msra.mxu0 %v129
    %151 = vmatprep.subr.bf16.mxu0 0
    %152 = vmatpush1.bf16.msra.mxu0 %v130
    %153 = vmatprep.subr.bf16.mxu0 0
    %154 = vmatpush1.bf16.msra.mxu0 %v131
    %155 = vmatprep.subr.bf16.mxu0 0
    %156 = vmatpush1.bf16.msra.mxu0 %v132
    %157 = vmatprep.subr.bf16.mxu0 0
    %158 = vmatpush1.bf16.msra.mxu0 0
    %159 = vmatprep.subr.bf16.mxu0 0
    %160 = vmatpush1.bf16.msra.mxu0 0
    %161 = vmatprep.subr.bf16.mxu0 0
    %162 = vmatpush1.bf16.msra.mxu0 0
    %163 = vmatprep.subr.bf16.mxu0 0
    %164 = vmatpush1.bf16.msra.mxu0 0
    %165 = vmatprep.subr.bf16.mxu0 0
    %166 = vmatpush1.bf16.msra.mxu0 0
    %167 = vmatprep.subr.bf16.mxu0 0
    %168 = vmatpush1.bf16.msra.mxu0 0
    %169 = vmatprep.subr.bf16.mxu0 0
    %170 = vmatpush1.bf16.msra.mxu0 0
    %171 = vmatprep.subr.bf16.mxu0 0
    %172 = vmatpush1.bf16.msra.mxu0 0
    %173 = vmatprep.mubr.bf16.mxu0 0
    %174 = vmatmul.mubr.bf16.gmra.mrb[0].mxu0 %v69
    %v175 = vpop.f32.mrb[0].mxu0
    %v176 = vadd.f32 %v91, %v175
    %v177 = vpop.f32.mrb[0].mxu0
    %v178 = vpop.f32.mrb[0].mxu0
    %v179 = vpop.f32.mrb[0].mxu0
    %180 = vdwg.mxu0
    %v181 = vmax.f32 %v176, 0.0
    %v182 = vpack.c.bf16 %v181, %v181
    %v183 = vld [vmem:[#allocation5] sm:$0xf]
    %v184 = vld [vmem:[#allocation5 + $0x4] sm:$0xf]
    %v185 = vld [vmem:[#allocation5 + $0x8] sm:$0xf]
    %v186 = vld [vmem:[#allocation5 + $0xc] sm:$0xf]
    %v187 = vld [vmem:[#allocation5 + $0x10] sm:$0xf]
    %v188 = vld [vmem:[#allocation5 + $0x14] sm:$0xf]
    %v189 = vld [vmem:[#allocation5 + $0x18] sm:$0xf]
    %v190 = vld [vmem:[#allocation5 + $0x1c] sm:$0xf]
    %v191 = vld [vmem:[#allocation5 + $0x20] sm:$0xf]
    %v192 = vld [vmem:[#allocation5 + $0x24] sm:$0xf]
    %v193 = vld [vmem:[#allocation5 + $0x28] sm:$0xf]
    %v194 = vld [vmem:[#allocation5 + $0x2c] sm:$0xf]
    %v195 = vld [vmem:[#allocation5 + $0x30] sm:$0xf]
    %v196 = vld [vmem:[#allocation5 + $0x34] sm:$0xf]
    %v197 = vld [vmem:[#allocation5 + $0x38] sm:$0xf]
    %v198 = vld [vmem:[#allocation5 + $0x3c] sm:$0xf]
    %v199 = vld [vmem:[%s4] sm:$0x1]
    %v201 = vlaneseq
    %v202 = vshrl.u32 %v201, 7
    %v203 = vsub.s32 0, %v202
    %v204 = vrot.slane %v199, %v203
    %v222 = vunpack.c.l.b16 %v183
    %v223 = vunpack.c.l.b16 %v184
    %v224 = vunpack.c.l.b16 %v185
    %v225 = vunpack.c.l.b16 %v186
    %v226 = vunpack.c.l.b16 %v187
    %v227 = vunpack.c.l.b16 %v188
    %v228 = vunpack.c.l.b16 %v189
    %v229 = vunpack.c.l.b16 %v190
    %v230 = vunpack.c.l.b16 %v191
    %v231 = vunpack.c.l.b16 %v192
    %v232 = vunpack.c.l.b16 %v193
    %v233 = vunpack.c.l.b16 %v194
    %v234 = vunpack.c.l.b16 %v195
    %v235 = vunpack.c.l.b16 %v196
    %v236 = vunpack.c.l.b16 %v197
    %v237 = vunpack.c.l.b16 %v198
    %v238 = vpack.c.b16 %v223, %v222
    %v239 = vpack.c.b16 %v225, %v224
    %v240 = vpack.c.b16 %v227, %v226
    %v241 = vpack.c.b16 %v229, %v228
    %v242 = vpack.c.b16 %v231, %v230
    %v243 = vpack.c.b16 %v233, %v232
    %v244 = vpack.c.b16 %v235, %v234
    %v245 = vpack.c.b16 %v237, %v236
    %254 = vmatprep.subr.bf16.mxu0 0
    %255 = vmatpush1.bf16.msra.mxu0 %v238
    %256 = vmatprep.subr.bf16.mxu0 0
    %257 = vmatpush1.bf16.msra.mxu0 %v239
    %258 = vmatprep.subr.bf16.mxu0 0
    %259 = vmatpush1.bf16.msra.mxu0 %v240
    %260 = vmatprep.subr.bf16.mxu0 0
    %261 = vmatpush1.bf16.msra.mxu0 %v241
    %262 = vmatprep.subr.bf16.mxu0 0
    %263 = vmatpush1.bf16.msra.mxu0 %v242
    %264 = vmatprep.subr.bf16.mxu0 0
    %265 = vmatpush1.bf16.msra.mxu0 %v243
    %266 = vmatprep.subr.bf16.mxu0 0
    %267 = vmatpush1.bf16.msra.mxu0 %v244
    %268 = vmatprep.subr.bf16.mxu0 0
    %269 = vmatpush1.bf16.msra.mxu0 %v245
    %270 = vmatprep.subr.bf16.mxu0 0
    %271 = vmatpush1.bf16.msra.mxu0 0
    %272 = vmatprep.subr.bf16.mxu0 0
    %273 = vmatpush1.bf16.msra.mxu0 0
    %274 = vmatprep.subr.bf16.mxu0 0
    %275 = vmatpush1.bf16.msra.mxu0 0
    %276 = vmatprep.subr.bf16.mxu0 0
    %277 = vmatpush1.bf16.msra.mxu0 0
    %278 = vmatprep.subr.bf16.mxu0 0
    %279 = vmatpush1.bf16.msra.mxu0 0
    %280 = vmatprep.subr.bf16.mxu0 0
    %281 = vmatpush1.bf16.msra.mxu0 0
    %282 = vmatprep.subr.bf16.mxu0 0
    %283 = vmatpush1.bf16.msra.mxu0 0
    %284 = vmatprep.subr.bf16.mxu0 0
    %285 = vmatpush1.bf16.msra.mxu0 0
    %286 = vmatprep.mubr.bf16.mxu0 0
    %287 = vmatmul.mubr.bf16.gmra.mrb[0].mxu0 %v182
    %v288 = vpop.f32.mrb[0].mxu0
    %v289 = vadd.f32 %v204, %v288
    %v290 = vpop.f32.mrb[0].mxu0
    %v291 = vpop.f32.mrb[0].mxu0
    %v292 = vpop.f32.mrb[0].mxu0
    %293 = vdwg.mxu0
    %v294 = vmax.f32 %v289, 0.0
    %v295 = vpack.c.bf16 %v294, %v294
    %v296 = vld [vmem:[#allocation7] sm:$0xf]
    %v297 = vld [vmem:[#allocation7 + $0x4] sm:$0xf]
    %v298 = vld [vmem:[#allocation7 + $0x8] sm:$0xf]
    %v299 = vld [vmem:[#allocation7 + $0xc] sm:$0xf]
    %v300 = vld [vmem:[#allocation7 + $0x10] sm:$0xf]
    %v301 = vld [vmem:[#allocation7 + $0x14] sm:$0xf]
    %v302 = vld [vmem:[#allocation7 + $0x18] sm:$0xf]
    %v303 = vld [vmem:[#allocation7 + $0x1c] sm:$0xf]
    %v304 = vld [vmem:[#allocation7 + $0x20] sm:$0xf]
    %v305 = vld [vmem:[#allocation7 + $0x24] sm:$0xf]
    %v306 = vld [vmem:[#allocation7 + $0x28] sm:$0xf]
    %v307 = vld [vmem:[#allocation7 + $0x2c] sm:$0xf]
    %v308 = vld [vmem:[#allocation7 + $0x30] sm:$0xf]
    %v309 = vld [vmem:[#allocation7 + $0x34] sm:$0xf]
    %v310 = vld [vmem:[#allocation7 + $0x38] sm:$0xf]
    %v311 = vld [vmem:[#allocation7 + $0x3c] sm:$0xf]
    %v312 = vld [vmem:[%s6] sm:$0x1]
    %v314 = vlaneseq
    %v315 = vshrl.u32 %v314, 7
    %v316 = vsub.s32 0, %v315
    %v317 = vrot.slane %v312, %v316
    %v335 = vunpack.c.l.b16 %v296
    %v336 = vunpack.c.l.b16 %v297
    %v337 = vunpack.c.l.b16 %v298
    %v338 = vunpack.c.l.b16 %v299
    %v339 = vunpack.c.l.b16 %v300
    %v340 = vunpack.c.l.b16 %v301
    %v341 = vunpack.c.l.b16 %v302
    %v342 = vunpack.c.l.b16 %v303
    %v343 = vunpack.c.l.b16 %v304
    %v344 = vunpack.c.l.b16 %v305
    %v345 = vunpack.c.l.b16 %v306
    %v346 = vunpack.c.l.b16 %v307
    %v347 = vunpack.c.l.b16 %v308
    %v348 = vunpack.c.l.b16 %v309
    %v349 = vunpack.c.l.b16 %v310
    %v350 = vunpack.c.l.b16 %v311
    %v351 = vpack.c.b16 %v336, %v335
    %v352 = vpack.c.b16 %v338, %v337
    %v353 = vpack.c.b16 %v340, %v339
    %v354 = vpack.c.b16 %v342, %v341
    %v355 = vpack.c.b16 %v344, %v343
    %v356 = vpack.c.b16 %v346, %v345
    %v357 = vpack.c.b16 %v348, %v347
    %v358 = vpack.c.b16 %v350, %v349
    %367 = vmatprep.subr.bf16.mxu0 0
    %368 = vmatpush1.bf16.msra.mxu0 %v351
    %369 = vmatprep.subr.bf16.mxu0 0
    %370 = vmatpush1.bf16.msra.mxu0 %v352
    %371 = vmatprep.subr.bf16.mxu0 0
    %372 = vmatpush1.bf16.msra.mxu0 %v353
    %373 = vmatprep.subr.bf16.mxu0 0
    %374 = vmatpush1.bf16.msra.mxu0 %v354
    %375 = vmatprep.subr.bf16.mxu0 0
    %376 = vmatpush1.bf16.msra.mxu0 %v355
    %377 = vmatprep.subr.bf16.mxu0 0
    %378 = vmatpush1.bf16.msra.mxu0 %v356
    %379 = vmatprep.subr.bf16.mxu0 0
    %380 = vmatpush1.bf16.msra.mxu0 %v357
    %381 = vmatprep.subr.bf16.mxu0 0
    %382 = vmatpush1.bf16.msra.mxu0 %v358
    %383 = vmatprep.subr.bf16.mxu0 0
    %384 = vmatpush1.bf16.msra.mxu0 0
    %385 = vmatprep.subr.bf16.mxu0 0
    %386 = vmatpush1.bf16.msra.mxu0 0
    %387 = vmatprep.subr.bf16.mxu0 0
    %388 = vmatpush1.bf16.msra.mxu0 0
    %389 = vmatprep.subr.bf16.mxu0 0
    %390 = vmatpush1.bf16.msra.mxu0 0
    %391 = vmatprep.subr.bf16.mxu0 0
    %392 = vmatpush1.bf16.msra.mxu0 0
    %393 = vmatprep.subr.bf16.mxu0 0
    %394 = vmatpush1.bf16.msra.mxu0 0
    %395 = vmatprep.subr.bf16.mxu0 0
    %396 = vmatpush1.bf16.msra.mxu0 0
    %397 = vmatprep.subr.bf16.mxu0 0
    %398 = vmatpush1.bf16.msra.mxu0 0
    %399 = vmatprep.mubr.bf16.mxu0 0
    %400 = vmatmul.mubr.bf16.gmra.mrb[0].mxu0 %v295
    %v401 = vpop.f32.mrb[0].mxu0
    %v402 = vadd.f32 %v317, %v401
    %v403 = vpop.f32.mrb[0].mxu0
    %v404 = vpop.f32.mrb[0].mxu0
    %v405 = vpop.f32.mrb[0].mxu0
    %406 = vdwg.mxu0
    %v407 = vmax.f32 %v402, 0.0
    %408 = vst [vmem:[#allocation8] sm:$0xff] %v407
    // Predicated region
    $region42: #{_run.1} parent=1 // pred_check
      _
    $region43: #{_run.1} parent=1 // pred_check_branch
      %410 = sbr.rel (0) target = $region45
    $region44: #{_run.1} parent=1 // pred_region
      %s412 = ssub.s32 128, 128
      %413 = vsyncadd [#allocation4], %s412
      %s415 = sshll.u32 [#allocation8], 4
      %s416 = int_to_ptr.vmem [resolvable:$true] %s415
      %418 = dma.vmem_to_hbm [thread:$0]  %s416, 128, %s7, [#allocation4]
    $region45: #{_run.1} parent=1 // pred_fallthru
      _
    // Predicated region
    $region46: #{_run.1} parent=1 // pred_check
      _
    $region47: #{_run.1} parent=1 // pred_check_branch
      %420 = sbr.rel (0) target = $region49
    $region48: #{_run.1} parent=1 // pred_region
      %421 = dma.done [#allocation4], 128
    $region49: #{_run.1} parent=1 // pred_fallthru
      _
    %422 = vsyncpa [#allocation3], 1
    %423 = vsyncpa [#allocation6], 1
    %424 = vsyncpa [#allocation4], 1

</llo_original>
